<compile_context>
chip_gen: v7x
topology: tpu7x:2x2x1
jax: 0.10.0
libtpu: 0.0.40
codegen_flags: <defaults>
</compile_context>

<pallas_src>
import functools

import jax
import jax.numpy as jnp
from jax.experimental import pallas as pl
from jax.experimental.pallas import tpu as pltpu

INPUT_SIZE = 21 * 3          # 63, per the PyTorch module
NUM_CLASSES = 29             # small arbitrary class count (ASL-alphabet-ish)
H1, H2 = 256, 128

D_PAD = 64                   # 63 -> 64: aligned lane layout for x / sublanes for w1
C_PAD = 128                  # 29 -> 128: lane-dense output stores (no vst.msk)


def _round_up(x, m):
    return ((x + m - 1) // m) * m


def _mlp_kernel(x_ref, w1_ref, b1_ref, w2_ref, b2_ref, w3_ref, b3_ref, o_ref):
    # All matmul operands are bf16 (native MXU path); accumulation is f32;
    # bias add + ReLU stay f32 (v5e VPU has no bf16).
    # Layer 1: Linear + ReLU   (Dropout(0.3) is identity at inference)
    h1 = jnp.dot(x_ref[...], w1_ref[...], preferred_element_type=jnp.float32)
    h1 = jnp.maximum(h1 + b1_ref[...], 0.0)
    # Layer 2: Linear + ReLU   (Dropout(0.3) is identity at inference)
    h2 = jnp.dot(h1.astype(jnp.bfloat16), w2_ref[...],
                 preferred_element_type=jnp.float32)
    h2 = jnp.maximum(h2 + b2_ref[...], 0.0)
    # Layer 3: Linear (logits) into a lane-dense (bm, 128) tile, stored in the
    # output dtype (bf16 by default -> half the HBM writeback of f32).
    out = jnp.dot(h2.astype(jnp.bfloat16), w3_ref[...],
                  preferred_element_type=jnp.float32)
    o_ref[...] = (out + b3_ref[...]).astype(o_ref.dtype)
    # TODO(synk): training-mode Dropout(0.3) (pltpu.prng_random_bits mask) is
    # omitted; eval-mode forward (identity dropout) is reproduced exactly.


def pack_params(params):
    """One-time packing of nn.Linear-style params (weights stored [in, out])
    into the kernel layout: bf16 MXU operands, f32 biases, w1 zero-padded
    63->64 input rows, w3/b3 zero-padded to 128 output columns.
    Returns (packed_dict, num_classes)."""
    n_cls = params["w3"].shape[1]
    assert n_cls <= C_PAD
    w1 = (jnp.zeros((D_PAD, H1), jnp.float32)
          .at[:INPUT_SIZE, :].set(params["w1"]).astype(jnp.bfloat16))
    b1 = params["b1"].reshape(1, H1).astype(jnp.float32)
    w2 = params["w2"].astype(jnp.bfloat16)
    b2 = params["b2"].reshape(1, H2).astype(jnp.float32)
    w3 = (jnp.zeros((H2, C_PAD), jnp.float32)
          .at[:, :n_cls].set(params["w3"]).astype(jnp.bfloat16))
    b3 = (jnp.zeros((1, C_PAD), jnp.float32)
          .at[:, :n_cls].set(params["b3"].reshape(1, n_cls)))
    return {"w1": w1, "b1": b1, "w2": w2, "b2": b2, "w3": w3, "b3": b3}, n_cls


@functools.partial(jax.jit,
                   static_argnames=("num_classes", "bm", "out_dtype",
                                    "return_padded"))
def asl_landmark_forward(x, packed, *, num_classes, bm=512,
                         out_dtype=jnp.bfloat16, return_padded=False):
    """x: [B, INPUT_SIZE] float32.  packed: output of pack_params.
    Returns [B, num_classes] logits (out_dtype, bf16 by default), or the
    lane-dense padded [B, 128] tensor when return_padded=True."""
    B, D = x.shape
    assert D == INPUT_SIZE

    # x prep: 63 -> 64 feature pad + bf16 cast only.  No batch zero-padding:
    # the ragged last batch block is handled by Pallas (garbage input rows are
    # computed on but their output rows are discarded on store; there are no
    # cross-row reductions).  allow_input_fusion below lets XLA fuse this
    # pad/cast into the pallas_call input stream instead of a separate HBM
    # round trip over the whole batch.
    x_p = jnp.pad(x, ((0, 0), (0, D_PAD - INPUT_SIZE))).astype(jnp.bfloat16)

    # Batch tile: target >= 4 grid steps (megacore sharding on v7x + pipelined
    # DMA overlap) while keeping tiles >= 8 rows and <= bm (512 default; tiled
    # HBM-bound data plateaus at ~85% roofline for 512-row tiles).
    bm_eff = min(bm, max(8, _round_up(pl.cdiv(B, 4), 8)))
    bm_eff = min(bm_eff, _round_up(B, 8))     # never exceed the 8-aligned batch
    grid_len = pl.cdiv(B, bm_eff)

    const = lambda i: (0, 0)  # weights/biases: same (whole) block every step

    def wspec(shape):
        # Constant blocks: single-buffered -- no point double-buffering data
        # whose index_map never changes.
        return pl.BlockSpec(shape, const, pipeline_mode=pl.Buffered(1))

    out_padded = pl.pallas_call(
        _mlp_kernel,
        out_shape=jax.ShapeDtypeStruct((B, C_PAD), out_dtype),
        grid_spec=pltpu.PrefetchScalarGridSpec(
            num_scalar_prefetch=0,
            grid=(grid_len,),
            in_specs=[
                pl.BlockSpec((bm_eff, D_PAD), lambda i: (i, 0)),   # x tile
                wspec((D_PAD, H1)),    # w1 (row-padded)
                wspec((1, H1)),        # b1
                wspec((H1, H2)),       # w2
                wspec((1, H2)),        # b2
                wspec((H2, C_PAD)),    # w3 (col-padded)
                wspec((1, C_PAD)),     # b3 (col-padded)
            ],
            out_specs=pl.BlockSpec((bm_eff, C_PAD), lambda i: (i, 0)),
        ),
        compiler_params=pltpu.CompilerParams(
            dimension_semantics=("parallel",),
            # Actual per-step footprint is ~2-5 MiB; 16 MiB leaves ample
            # headroom on every chip without hogging v7x's 64 MiB physical VMEM.
            vmem_limit_bytes=16 * 1024 * 1024,
            # Allow XLA to fuse the x pad/cast (and the tiny one-time weight
            # packing, if co-scheduled) into the kernel's input reads.
            allow_input_fusion=[True] * 7,
        ),
    )(x_p, packed["w1"], packed["b1"], packed["w2"], packed["b2"],
      packed["w3"], packed["b3"])

    if return_padded:
        # Lane-dense (B, 128) logits; columns >= num_classes are exactly zero
        # and must be ignored downstream (e.g. argmax over [:, :num_classes]).
        return out_padded
    return out_padded[:, :num_classes]


def init_params(key, num_classes=NUM_CLASSES):
    """Deterministic synthetic parameters matching nn.Linear shapes."""
    ks = jax.random.split(key, 6)

    def linear(kw, kb, fan_in, fan_out):
        # PyTorch nn.Linear default init: U(-1/sqrt(fan_in), 1/sqrt(fan_in))
        bound = 1.0 / jnp.sqrt(fan_in)
        w = jax.random.uniform(kw, (fan_in, fan_out), jnp.float32, -bound, bound)
        b = jax.random.uniform(kb, (1, fan_out), jnp.float32, -bound, bound)
        return w, b

    w1, b1 = linear(ks[0], ks[1], INPUT_SIZE, H1)
    w2, b2 = linear(ks[2], ks[3], H1, H2)
    w3, b3 = linear(ks[4], ks[5], H2, num_classes)
    return {"w1": w1, "b1": b1, "w2": w2, "b2": b2, "w3": w3, "b3": b3}


def _reference(x, p):
    # Pure-f32 reference (eval-mode dropout = identity).
    h1 = jnp.maximum(x @ p["w1"] + p["b1"], 0.0)
    h2 = jnp.maximum(h1 @ p["w2"] + p["b2"], 0.0)
    return h2 @ p["w3"] + p["b3"]


if __name__ == "__main__":
    key = jax.random.PRNGKey(0)
    k_x, k_p = jax.random.split(key)

    B = 12  # deliberately not a multiple of 8: exercises the ragged last block
    x = jax.random.normal(k_x, (B, INPUT_SIZE), dtype=jnp.float32)
    params = init_params(k_p)
    packed, n_cls = pack_params(params)

    out = asl_landmark_forward(x, packed, num_classes=n_cls)
    out = jax.block_until_ready(out)

    ref = _reference(x, params)
    assert out.shape == (B, n_cls)
    out_f32 = out.astype(jnp.float32)
    # bf16 MXU operands + bf16 output vs. the pure-f32 reference: compare
    # loosely (logits here are O(0.1-1), bf16 error is ~0.2% relative).
    assert jnp.allclose(out_f32, ref, atol=5e-2, rtol=5e-2), (
        float(jnp.max(jnp.abs(out_f32 - ref))))

    print("KERNEL_OK")
</pallas_src>

<mosaic_0001>
module attributes {stable_mosaic.version = 11 : i64} {
  func.func @_mlp_kernel(%arg0: i32, %arg1: memref<8x64xbf16, #tpu.memory_space<vmem>>, %arg2: memref<64x256xbf16, #tpu.memory_space<vmem>>, %arg3: memref<1x256xf32, #tpu.memory_space<vmem>>, %arg4: memref<256x128xbf16, #tpu.memory_space<vmem>>, %arg5: memref<1x128xf32, #tpu.memory_space<vmem>>, %arg6: memref<128x128xbf16, #tpu.memory_space<vmem>>, %arg7: memref<1x128xf32, #tpu.memory_space<vmem>>, %arg8: memref<8x128xbf16, #tpu.memory_space<vmem>>) attributes {dimension_semantics = [#tpu.dimension_semantics<parallel>], iteration_bounds = array<i64: 2>, scalar_prefetch = 0 : i64, scratch_operands = 0 : i64, tpu.core_type = #tpu.core_type<tc>, window_params = [{transform_indices = @transform_0, window_bounds = array<i64: 8, 64>}, {pipeline_mode = #tpu.pipeline_mode<synchronous>, transform_indices = @transform_1, window_bounds = array<i64: 64, 256>}, {pipeline_mode = #tpu.pipeline_mode<synchronous>, transform_indices = @transform_2, window_bounds = array<i64: 1, 256>}, {pipeline_mode = #tpu.pipeline_mode<synchronous>, transform_indices = @transform_3, window_bounds = array<i64: 256, 128>}, {pipeline_mode = #tpu.pipeline_mode<synchronous>, transform_indices = @transform_4, window_bounds = array<i64: 1, 128>}, {pipeline_mode = #tpu.pipeline_mode<synchronous>, transform_indices = @transform_5, window_bounds = array<i64: 128, 128>}, {pipeline_mode = #tpu.pipeline_mode<synchronous>, transform_indices = @transform_6, window_bounds = array<i64: 1, 128>}, {transform_indices = @transform_7, window_bounds = array<i64: 8, 128>}]} {
    %c0 = arith.constant 0 : index
    %c0_0 = arith.constant 0 : index
    %0 = vector.load %arg1[%c0, %c0_0] : memref<8x64xbf16, #tpu.memory_space<vmem>>, vector<8x64xbf16>
    %c0_1 = arith.constant 0 : index
    %c0_2 = arith.constant 0 : index
    %1 = vector.load %arg2[%c0_1, %c0_2] : memref<64x256xbf16, #tpu.memory_space<vmem>>, vector<64x256xbf16>
    %cst = arith.constant dense<0.000000e+00> : vector<8x256xf32>
    %2 = tpu.matmul %0, %1, %cst {dimension_numbers = #tpu.dot_dimension_numbers<[1], [0], [0], [1], [0, 0, 1, 1], [], []>} : vector<8x64xbf16>, vector<64x256xbf16>, vector<8x256xf32> -> vector<8x256xf32>
    %c0_3 = arith.constant 0 : index
    %c0_4 = arith.constant 0 : index
    %3 = vector.load %arg3[%c0_3, %c0_4] : memref<1x256xf32, #tpu.memory_space<vmem>>, vector<1x256xf32>
    %4 = vector.broadcast %3 : vector<1x256xf32> to vector<8x256xf32>
    %5 = arith.addf %2, %4 : vector<8x256xf32>
    %cst_5 = arith.constant 0.000000e+00 : f32
    %6 = vector.broadcast %cst_5 : f32 to vector<8x256xf32>
    %7 = arith.maximumf %5, %6 : vector<8x256xf32>
    %8 = arith.truncf %7 : vector<8x256xf32> to vector<8x256xbf16>
    %c0_6 = arith.constant 0 : index
    %c0_7 = arith.constant 0 : index
    %9 = vector.load %arg4[%c0_6, %c0_7] : memref<256x128xbf16, #tpu.memory_space<vmem>>, vector<256x128xbf16>
    %cst_8 = arith.constant dense<0.000000e+00> : vector<8x128xf32>
    %10 = tpu.matmul %8, %9, %cst_8 {dimension_numbers = #tpu.dot_dimension_numbers<[1], [0], [0], [1], [0, 0, 1, 1], [], []>} : vector<8x256xbf16>, vector<256x128xbf16>, vector<8x128xf32> -> vector<8x128xf32>
    %c0_9 = arith.constant 0 : index
    %c0_10 = arith.constant 0 : index
    %11 = vector.load %arg5[%c0_9, %c0_10] : memref<1x128xf32, #tpu.memory_space<vmem>>, vector<1x128xf32>
    %12 = vector.broadcast %11 : vector<1x128xf32> to vector<8x128xf32>
    %13 = arith.addf %10, %12 : vector<8x128xf32>
    %cst_11 = arith.constant 0.000000e+00 : f32
    %14 = vector.broadcast %cst_11 : f32 to vector<8x128xf32>
    %15 = arith.maximumf %13, %14 : vector<8x128xf32>
    %16 = arith.truncf %15 : vector<8x128xf32> to vector<8x128xbf16>
    %c0_12 = arith.constant 0 : index
    %c0_13 = arith.constant 0 : index
    %17 = vector.load %arg6[%c0_12, %c0_13] : memref<128x128xbf16, #tpu.memory_space<vmem>>, vector<128x128xbf16>
    %cst_14 = arith.constant dense<0.000000e+00> : vector<8x128xf32>
    %18 = tpu.matmul %16, %17, %cst_14 {dimension_numbers = #tpu.dot_dimension_numbers<[1], [0], [0], [1], [0, 0, 1, 1], [], []>} : vector<8x128xbf16>, vector<128x128xbf16>, vector<8x128xf32> -> vector<8x128xf32>
    %c0_15 = arith.constant 0 : index
    %c0_16 = arith.constant 0 : index
    %19 = vector.load %arg7[%c0_15, %c0_16] : memref<1x128xf32, #tpu.memory_space<vmem>>, vector<1x128xf32>
    %20 = vector.broadcast %19 : vector<1x128xf32> to vector<8x128xf32>
    %21 = arith.addf %18, %20 : vector<8x128xf32>
    %22 = arith.truncf %21 : vector<8x128xf32> to vector<8x128xbf16>
    %c0_17 = arith.constant 0 : index
    %c0_18 = arith.constant 0 : index
    %23 = vector.load %arg8[%c0_17, %c0_18] : memref<8x128xbf16, #tpu.memory_space<vmem>>, vector<8x128xbf16>
    tpu.vector_store %arg8[%c0_17, %c0_18], %22 {strides = array<i32>} : memref<8x128xbf16, #tpu.memory_space<vmem>>, vector<8x128xbf16>,
    return
  }
  func.func @transform_0(%arg0: i32) -> (i32, i32) {
    %c0_i32 = arith.constant 0 : i32
    %c0_i32_0 = arith.constant 0 : i32
    return %arg0, %c0_i32 : i32, i32
  }
  func.func @transform_1(%arg0: i32) -> (i32, i32) {
    %c0_i32 = arith.constant 0 : i32
    %c0_i32_0 = arith.constant 0 : i32
    %c0_i32_1 = arith.constant 0 : i32
    return %c0_i32, %c0_i32_0 : i32, i32
  }
  func.func @transform_2(%arg0: i32) -> (i32, i32) {
    %c0_i32 = arith.constant 0 : i32
    %c0_i32_0 = arith.constant 0 : i32
    %c0_i32_1 = arith.constant 0 : i32
    return %c0_i32, %c0_i32_0 : i32, i32
  }
  func.func @transform_3(%arg0: i32) -> (i32, i32) {
    %c0_i32 = arith.constant 0 : i32
    %c0_i32_0 = arith.constant 0 : i32
    %c0_i32_1 = arith.constant 0 : i32
    return %c0_i32, %c0_i32_0 : i32, i32
  }
  func.func @transform_4(%arg0: i32) -> (i32, i32) {
    %c0_i32 = arith.constant 0 : i32
    %c0_i32_0 = arith.constant 0 : i32
    %c0_i32_1 = arith.constant 0 : i32
    return %c0_i32, %c0_i32_0 : i32, i32
  }
  func.func @transform_5(%arg0: i32) -> (i32, i32) {
    %c0_i32 = arith.constant 0 : i32
    %c0_i32_0 = arith.constant 0 : i32
    %c0_i32_1 = arith.constant 0 : i32
    return %c0_i32, %c0_i32_0 : i32, i32
  }
  func.func @transform_6(%arg0: i32) -> (i32, i32) {
    %c0_i32 = arith.constant 0 : i32
    %c0_i32_0 = arith.constant 0 : i32
    %c0_i32_1 = arith.constant 0 : i32
    return %c0_i32, %c0_i32_0 : i32, i32
  }
  func.func @transform_7(%arg0: i32) -> (i32, i32) {
    %c0_i32 = arith.constant 0 : i32
    %c0_i32_0 = arith.constant 0 : i32
    return %arg0, %c0_i32 : i32, i32
  }
}

</mosaic_0001>

<llo_original>
// kernel: asl_landmark_forward.2
$region0: #{asl_landmark_forward.2}
  #allocation0 [shape = 'u32[]', space=smem, size = 0x4, offset = 0x4, fixed_abs, tag = 'smem constant byte address 0x4 - core index']
  #allocation1 [shape = 'u32[144,128]{1,0:T(1,128)}', space=vmem, size = 0x12000, scoped, tag = 'internal scratch']
  #allocation2 [shape = 'u32[2048]{0}', space=vmem, size = 0x2000, scoped, tag = 'scoped memory for asl_landmark_forward.2']
  #allocation3 [shape = 'u32[2048]{0}', space=vmem, size = 0x2000, scoped, tag = 'scoped memory for asl_landmark_forward.2']
  #allocation4 [shape = 'u32[2048]{0}', space=vmem, size = 0x2000, scoped, tag = 'scoped memory for asl_landmark_forward.2']
  #allocation5 [shape = 'u32[2048]{0}', space=vmem, size = 0x2000, scoped, tag = 'scoped memory for asl_landmark_forward.2']
  #allocation6 [shape = 'u32[2048]{0}', space=vmem, size = 0x2000, scoped, tag = 'scoped memory for asl_landmark_forward.2']
  %s0 = inlined_call_operand.hbm [shape: bf16[64,256], index: 0, kind: input, shape index: {}]
  %s1 = inlined_call_operand.vmem [shape: f32[1,256], index: 1, kind: input, shape index: {}]
  %s2 = inlined_call_operand.hbm [shape: bf16[256,128], index: 2, kind: input, shape index: {}]
  %s3 = inlined_call_operand.vmem [shape: f32[1,128], index: 3, kind: input, shape index: {}]
  %s4 = inlined_call_operand.hbm [shape: bf16[128,128], index: 4, kind: input, shape index: {}]
  %s5 = inlined_call_operand.vmem [shape: f32[1,128], index: 5, kind: input, shape index: {}]
  %s6 = inlined_call_operand.vmem [shape: bf16[12,63], index: 6, kind: input, shape index: {}]
  %s7 = inlined_call_operand.<no memory space> [shape: bf16[], index: 7, kind: input, shape index: {}]
  %s8 = inlined_call_operand.hbm [shape: bf16[12,128], index: 8, kind: output, shape index: {}]
  %s9 = sld [smem:[#allocation0]]
  $region73: #{asl_landmark_forward.2} parent=0
    _
  %s11 = ssub.s32 1, %s9
  %s12 = scalar_select 0, %s11, %s9
  %v13 = vstv %s7
  %v14 = vunpack.i.l.bf16 %v13
  %v16 = vunpack.i.h.bf16 %v13
  $region1: #{asl_landmark_forward.2} parent=0
    #allocation7 [shape = 'u8[32768]{0}', space=vmem, size = 0x8000, scoped, tag = 'input window, operand 1, single buffered']
    #allocation8 [shape = 's32[2]{0}', space=sflag, size = 0x8, scoped, tag = 'scoped memory for asl_landmark_forward.2']
    #allocation9 [shape = 's32[2]{0}', space=sflag, size = 0x8, scoped, tag = 'scoped memory for asl_landmark_forward.2']
    #allocation10 [shape = 'u8[65536]{0}', space=vmem, size = 0x10000, scoped, tag = 'input window, operand 3, single buffered']
    #allocation11 [shape = 's32[1]{0}', space=sflag, size = 0x4, scoped, tag = 'scoped memory for asl_landmark_forward.2']
    #allocation12 [shape = 'u8[32768]{0}', space=vmem, size = 0x8000, scoped, tag = 'input window, operand 5, single buffered']
    #allocation13 [shape = 'u8[4096]{0}', space=vmem, size = 0x1000, scoped, tag = 'output window, operand 0']
    %18 = vsyncpa [#allocation8], 0
    %19 = vsyncpa [#allocation11], 0
    %20 = vsyncpa [#allocation9], 0
    %s21 = scalar_lea.sflag [#allocation9], 1
    %22 = vsyncpa %s21, 0
    loop: start=0, step=1, limit=4
    $region2: #{asl_landmark_forward.2} parent=1 // loop_pre_header
      _
    $region3: #{asl_landmark_forward.2} parent=1 // loop_header
      %s24 = sphi 0, %s28
      %p25 = scmp.ge.s32.totalorder %s24, 4
      %s34 = sphi 0, %s36
      %s37 = sphi 0, %s34
      %s38 = sphi 0, %s37
      %s54 = sphi 0, %s38
      %s58 = sphi 0, %s58
      %s60 = sphi 0, %s58
      %s61 = sphi 0, %s60
      %s75 = sphi 0, %s61
      %s79 = sphi 0, %s79
      %s81 = sphi 0, %s79
      %s82 = sphi 0, %s81
      %s96 = sphi 0, %s82
      %s100 = sphi 0, %s100
      %s102 = sphi 0, %s100
      %s103 = sphi 0, %s102
      %s117 = sphi 0, %s103
      %s121 = sphi 0, %s121
      %s123 = sphi 0, %s121
      %s124 = sphi 0, %s123
      %s138 = sphi 0, %s124
      %s142 = sphi 0, %s142
      %s144 = sphi 0, %s142
      %s145 = sphi 0, %s144
      %s159 = sphi 0, %s145
      %s163 = sphi 0, %s163
      %s165 = sphi 0, %s163
      %s166 = sphi 0, %s165
      %s180 = sphi 0, %s166
      %s186 = sphi 0, %s188
      %s189 = sphi 0, %s186
      %s190 = sphi 0, %s189
      %s206 = sphi 0, %s190
    $region4: #{asl_landmark_forward.2} parent=1 // loop_header_branch
      %27 = sbr.rel (%p25) target = $region8
    $region5: #{asl_landmark_forward.2} parent=1 // loop_body
      %s29 = ssub.s32 %s24, 1
      %s30 = ssub.s32 %s24, 2
      %s31 = sadd.s32 %s24, 1
      %s32 = ssub.s32 %s24, %s31
      %p33 = scmp.eq.s32.totalorder %s32, 0
      %s35 = sadd.s32 %s34, 1
      %s36 = scalar_select %p33, %s34, %s35
      %p39 = pneg %p33
      %p40 = scmp.eq.s32.totalorder %s24, 1
      %p41 = por %p39, %p40
      %p42 = scmp.ne.s32.totalorder %s34, %s37
      %p43 = scmp.eq.s32.totalorder %s24, 0
      %p44 = por %p42, %p43
      %p45 = scmp.ne.s32.totalorder %s34, %s37
      %p46 = scmp.eq.s32.totalorder %s29, 1
      %p47 = por %p45, %p46
      %p48 = scmp.ne.s32.totalorder %s37, %s38
      %p49 = scmp.eq.s32.totalorder %s29, 0
      %p50 = por %p48, %p49
      %p51 = scmp.ne.s32.totalorder %s37, %s38
      %p52 = scmp.eq.s32.totalorder %s30, 1
      %p53 = por %p51, %p52
      %p55 = scmp.ne.s32.totalorder %s38, %s54
      %p56 = scmp.eq.s32.totalorder %s30, 0
      %p57 = por %p55, %p56
      %s59 = sadd.s32 %s58, 1
      %p62 = scmp.eq.s32.totalorder %s24, 1
      %p63 = scmp.ne.s32.totalorder %s58, %s60
      %p64 = scmp.eq.s32.totalorder %s24, 0
      %p65 = por %p63, %p64
      %p66 = scmp.ne.s32.totalorder %s58, %s60
      %p67 = scmp.eq.s32.totalorder %s29, 1
      %p68 = por %p66, %p67
      %p69 = scmp.ne.s32.totalorder %s60, %s61
      %p70 = scmp.eq.s32.totalorder %s29, 0
      %p71 = por %p69, %p70
      %p72 = scmp.ne.s32.totalorder %s60, %s61
      %p73 = scmp.eq.s32.totalorder %s30, 1
      %p74 = por %p72, %p73
      %p76 = scmp.ne.s32.totalorder %s61, %s75
      %p77 = scmp.eq.s32.totalorder %s30, 0
      %p78 = por %p76, %p77
      %s80 = sadd.s32 %s79, 1
      %p83 = scmp.eq.s32.totalorder %s24, 1
      %p84 = scmp.ne.s32.totalorder %s79, %s81
      %p85 = scmp.eq.s32.totalorder %s24, 0
      %p86 = por %p84, %p85
      %p87 = scmp.ne.s32.totalorder %s79, %s81
      %p88 = scmp.eq.s32.totalorder %s29, 1
      %p89 = por %p87, %p88
      %p90 = scmp.ne.s32.totalorder %s81, %s82
      %p91 = scmp.eq.s32.totalorder %s29, 0
      %p92 = por %p90, %p91
      %p93 = scmp.ne.s32.totalorder %s81, %s82
      %p94 = scmp.eq.s32.totalorder %s30, 1
      %p95 = por %p93, %p94
      %p97 = scmp.ne.s32.totalorder %s82, %s96
      %p98 = scmp.eq.s32.totalorder %s30, 0
      %p99 = por %p97, %p98
      %s101 = sadd.s32 %s100, 1
      %p104 = scmp.eq.s32.totalorder %s24, 1
      %p105 = scmp.ne.s32.totalorder %s100, %s102
      %p106 = scmp.eq.s32.totalorder %s24, 0
      %p107 = por %p105, %p106
      %p108 = scmp.ne.s32.totalorder %s100, %s102
      %p109 = scmp.eq.s32.totalorder %s29, 1
      %p110 = por %p108, %p109
      %p111 = scmp.ne.s32.totalorder %s102, %s103
      %p112 = scmp.eq.s32.totalorder %s29, 0
      %p113 = por %p111, %p112
      %p114 = scmp.ne.s32.totalorder %s102, %s103
      %p115 = scmp.eq.s32.totalorder %s30, 1
      %p116 = por %p114, %p115
      %p118 = scmp.ne.s32.totalorder %s103, %s117
      %p119 = scmp.eq.s32.totalorder %s30, 0
      %p120 = por %p118, %p119
      %s122 = sadd.s32 %s121, 1
      %p125 = scmp.eq.s32.totalorder %s24, 1
      %p126 = scmp.ne.s32.totalorder %s121, %s123
      %p127 = scmp.eq.s32.totalorder %s24, 0
      %p128 = por %p126, %p127
      %p129 = scmp.ne.s32.totalorder %s121, %s123
      %p130 = scmp.eq.s32.totalorder %s29, 1
      %p131 = por %p129, %p130
      %p132 = scmp.ne.s32.totalorder %s123, %s124
      %p133 = scmp.eq.s32.totalorder %s29, 0
      %p134 = por %p132, %p133
      %p135 = scmp.ne.s32.totalorder %s123, %s124
      %p136 = scmp.eq.s32.totalorder %s30, 1
      %p137 = por %p135, %p136
      %p139 = scmp.ne.s32.totalorder %s124, %s138
      %p140 = scmp.eq.s32.totalorder %s30, 0
      %p141 = por %p139, %p140
      %s143 = sadd.s32 %s142, 1
      %p146 = scmp.eq.s32.totalorder %s24, 1
      %p147 = scmp.ne.s32.totalorder %s142, %s144
      %p148 = scmp.eq.s32.totalorder %s24, 0
      %p149 = por %p147, %p148
      %p150 = scmp.ne.s32.totalorder %s142, %s144
      %p151 = scmp.eq.s32.totalorder %s29, 1
      %p152 = por %p150, %p151
      %p153 = scmp.ne.s32.totalorder %s144, %s145
      %p154 = scmp.eq.s32.totalorder %s29, 0
      %p155 = por %p153, %p154
      %p156 = scmp.ne.s32.totalorder %s144, %s145
      %p157 = scmp.eq.s32.totalorder %s30, 1
      %p158 = por %p156, %p157
      %p160 = scmp.ne.s32.totalorder %s145, %s159
      %p161 = scmp.eq.s32.totalorder %s30, 0
      %p162 = por %p160, %p161
      %s164 = sadd.s32 %s163, 1
      %p167 = scmp.eq.s32.totalorder %s24, 1
      %p168 = scmp.ne.s32.totalorder %s163, %s165
      %p169 = scmp.eq.s32.totalorder %s24, 0
      %p170 = por %p168, %p169
      %p171 = scmp.ne.s32.totalorder %s163, %s165
      %p172 = scmp.eq.s32.totalorder %s29, 1
      %p173 = por %p171, %p172
      %p174 = scmp.ne.s32.totalorder %s165, %s166
      %p175 = scmp.eq.s32.totalorder %s29, 0
      %p176 = por %p174, %p175
      %p177 = scmp.ne.s32.totalorder %s165, %s166
      %p178 = scmp.eq.s32.totalorder %s30, 1
      %p179 = por %p177, %p178
      %p181 = scmp.ne.s32.totalorder %s166, %s180
      %p182 = scmp.eq.s32.totalorder %s30, 0
      %p183 = por %p181, %p182
      %s184 = ssub.s32 %s24, %s31
      %p185 = scmp.eq.s32.totalorder %s184, 0
      %s187 = sadd.s32 %s186, 1
      %s188 = scalar_select %p185, %s186, %s187
      %p191 = pneg %p185
      %p192 = scmp.eq.s32.totalorder %s24, 1
      %p193 = por %p191, %p192
      %p194 = scmp.ne.s32.totalorder %s186, %s189
      %p195 = scmp.eq.s32.totalorder %s24, 0
      %p196 = por %p194, %p195
      %p197 = scmp.ne.s32.totalorder %s186, %s189
      %p198 = scmp.eq.s32.totalorder %s29, 1
      %p199 = por %p197, %p198
      %p200 = scmp.ne.s32.totalorder %s189, %s190
      %p201 = scmp.eq.s32.totalorder %s29, 0
      %p202 = por %p200, %p201
      %p203 = scmp.ne.s32.totalorder %s189, %s190
      %p204 = scmp.eq.s32.totalorder %s30, 1
      %p205 = por %p203, %p204
      %p207 = scmp.ne.s32.totalorder %s190, %s206
      %p208 = scmp.eq.s32.totalorder %s30, 0
      %p209 = por %p207, %p208
      %p210 = scmp.le.s32.totalorder 1, %s24
      %p211 = scmp.lt.s32.totalorder %s24, 3
      %p212 = pnand %p210, %p211
      %p213 = pneg %p212
      // Predicated region
      $region9: #{asl_landmark_forward.2} parent=5 // pred_check
        _
      $region10: #{asl_landmark_forward.2} parent=5 // pred_check_branch
        %215 = sbr.rel (%p212) target = $region12
      $region11: #{asl_landmark_forward.2} parent=5 // pred_region
        %s216 = ssub.s32 %s24, 1
        // Predicated region
        $region13: #{asl_landmark_forward.2} parent=11 // pred_check
          %p217 = pneg %p71
        $region14: #{asl_landmark_forward.2} parent=11 // pred_check_branch
          %219 = sbr.rel (%p217) target = $region16
        $region15: #{asl_landmark_forward.2} parent=11 // pred_region
          %s221 = ssub.s32 1024, 1024
          %222 = vsyncadd [#allocation8], %s221
          %s223 = sshll.u32 [#allocation7], 4
          %s224 = int_to_ptr.vmem [resolvable:$true] %s223
          %229 = dma.hbm_to_vmem [thread:$0]  %s0, 1024, %s224, [#allocation8], 128, 128, 8
        $region16: #{asl_landmark_forward.2} parent=11 // pred_fallthru
          _
        // Predicated region
        $region17: #{asl_landmark_forward.2} parent=11 // pred_check
          %p230 = pneg %p92
        $region18: #{asl_landmark_forward.2} parent=11 // pred_check_branch
          %232 = sbr.rel (%p230) target = $region20
        $region19: #{asl_landmark_forward.2} parent=11 // pred_region
          _
        $region20: #{asl_landmark_forward.2} parent=11 // pred_fallthru
          _
        // Predicated region
        $region21: #{asl_landmark_forward.2} parent=11 // pred_check
          %p233 = pneg %p113
        $region22: #{asl_landmark_forward.2} parent=11 // pred_check_branch
          %235 = sbr.rel (%p233) target = $region24
        $region23: #{asl_landmark_forward.2} parent=11 // pred_region
          %s237 = ssub.s32 2048, 2048
          %238 = vsyncadd [#allocation11], %s237
          %s239 = sshll.u32 [#allocation10], 4
          %s240 = int_to_ptr.vmem [resolvable:$true] %s239
          %245 = dma.hbm_to_vmem [thread:$0]  %s2, 2048, %s240, [#allocation11], 64, 64, 4
        $region24: #{asl_landmark_forward.2} parent=11 // pred_fallthru
          _
        // Predicated region
        $region25: #{asl_landmark_forward.2} parent=11 // pred_check
          %p246 = pneg %p134
        $region26: #{asl_landmark_forward.2} parent=11 // pred_check_branch
          %248 = sbr.rel (%p246) target = $region28
        $region27: #{asl_landmark_forward.2} parent=11 // pred_region
          _
        $region28: #{asl_landmark_forward.2} parent=11 // pred_fallthru
          _
        // Predicated region
        $region29: #{asl_landmark_forward.2} parent=11 // pred_check
          %p249 = pneg %p155
        $region30: #{asl_landmark_forward.2} parent=11 // pred_check_branch
          %251 = sbr.rel (%p249) target = $region32
        $region31: #{asl_landmark_forward.2} parent=11 // pred_region
          %s253 = ssub.s32 1024, 1024
          %254 = vsyncadd [#allocation11], %s253
          %s255 = sshll.u32 [#allocation12], 4
          %s256 = int_to_ptr.vmem [resolvable:$true] %s255
          %261 = dma.hbm_to_vmem [thread:$0]  %s4, 1024, %s256, [#allocation11], 64, 64, 4
        $region32: #{asl_landmark_forward.2} parent=11 // pred_fallthru
          _
        // Predicated region
        $region33: #{asl_landmark_forward.2} parent=11 // pred_check
          %p262 = pneg %p176
        $region34: #{asl_landmark_forward.2} parent=11 // pred_check_branch
          %264 = sbr.rel (%p262) target = $region36
        $region35: #{asl_landmark_forward.2} parent=11 // pred_region
          _
        $region36: #{asl_landmark_forward.2} parent=11 // pred_fallthru
          _
      $region12: #{asl_landmark_forward.2} parent=5 // pred_fallthru
        _
      %p265 = scmp.lt.s32.totalorder %s24, 2
      // Predicated region
      $region37: #{asl_landmark_forward.2} parent=5 // pred_check
        %p266 = pneg %p265
      $region38: #{asl_landmark_forward.2} parent=5 // pred_check_branch
        %268 = sbr.rel (%p266) target = $region40
      $region39: #{asl_landmark_forward.2} parent=5 // pred_region
        // Predicated region
        $region41: #{asl_landmark_forward.2} parent=39 // pred_check
          %p269 = pneg %p44
        $region42: #{asl_landmark_forward.2} parent=39 // pred_check_branch
          %271 = sbr.rel (%p269) target = $region44
        $region43: #{asl_landmark_forward.2} parent=39 // pred_region
          %p272 = scmp.lt.s32.totalorder %s24, 1
          %s273 = scalar_select %p272, %s24, 1
          %s274 = smul.addr %s273, 4
          %s275 = scalar_lea.vmem %s6, %s274
        $region44: #{asl_landmark_forward.2} parent=39 // pred_fallthru
          _
      $region40: #{asl_landmark_forward.2} parent=5 // pred_fallthru
        _
      %p276 = scmp.le.s32.totalorder 1, %s24
      %p277 = scmp.lt.s32.totalorder %s24, 3
      %p278 = pnand %p276, %p277
      %p279 = pneg %p278
      // Predicated region
      $region45: #{asl_landmark_forward.2} parent=5 // pred_check
        _
      $region46: #{asl_landmark_forward.2} parent=5 // pred_check_branch
        %281 = sbr.rel (%p278) target = $region48
      $region47: #{asl_landmark_forward.2} parent=5 // pred_region
        #allocation14 [shape = 'u8[2048]{0}', space=vmem, size = 0x800, dematerialized = true, scoped, tag = 'FusionAdapter Buffer %fusion.1 = bf16[12,64]{1,0:T(8,128)(2,1)} fusion(%param_6.1, %param_7), kind=kLoop, calls=%fused_computation.1.clone, metadata={op_name="jit(asl_landmark_forward)/jit(_pad)/pad" stack_frame_id=1}']
        %s282 = ssub.s32 %s24, 1
        // Predicated region
        $region49: #{asl_landmark_forward.2} parent=47 // pred_check
          %p283 = pneg %p71
        $region50: #{asl_landmark_forward.2} parent=47 // pred_check_branch
          %285 = sbr.rel (%p283) target = $region52
        $region51: #{asl_landmark_forward.2} parent=47 // pred_region
          %286 = dma.done [#allocation8], 1024
        $region52: #{asl_landmark_forward.2} parent=47 // pred_fallthru
          _
        // Predicated region
        $region53: #{asl_landmark_forward.2} parent=47 // pred_check
          %p287 = pneg %p113
        $region54: #{asl_landmark_forward.2} parent=47 // pred_check_branch
          %289 = sbr.rel (%p287) target = $region56
        $region55: #{asl_landmark_forward.2} parent=47 // pred_region
          %290 = dma.done [#allocation11], 2048
        $region56: #{asl_landmark_forward.2} parent=47 // pred_fallthru
          _
        // Predicated region
        $region57: #{asl_landmark_forward.2} parent=47 // pred_check
          %p291 = pneg %p155
        $region58: #{asl_landmark_forward.2} parent=47 // pred_check_branch
          %293 = sbr.rel (%p291) target = $region60
        $region59: #{asl_landmark_forward.2} parent=47 // pred_region
          %294 = dma.done [#allocation11], 1024
        $region60: #{asl_landmark_forward.2} parent=47 // pred_fallthru
          _
        %p295 = scmp.lt.s32.totalorder %s29, 1
        %s296 = scalar_select %p295, %s29, 1
        %s297 = smul.addr %s296, 4
        %s298 = scalar_lea.vmem %s6, %s297
        %p299 = pneg %p50
        %p300 = pneg %p47
        %p301 = pneg %p71
        %p302 = pneg %p68
        %p303 = pneg %p92
        %p304 = pneg %p89
        %p305 = pneg %p113
        %p306 = pneg %p110
        %p307 = pneg %p134
        %p308 = pneg %p131
        %p309 = pneg %p155
        %p310 = pneg %p152
        %p311 = pneg %p176
        %p312 = pneg %p173
        %p313 = pneg %p202
        %p314 = pneg %p199
        %s315 = sand.u32 %s189, 1
        %s316 = scalar_lea.sflag [#allocation9], %s315
        %s317 = sand.u32 %s189, 1
        %s318 = smul.addr %s317, 4
        %s319 = scalar_lea.vmem [#allocation13], %s318
        %p320 = scmp.lt.s32.totalorder %s29, 1
        %s321 = scalar_select %p320, %s29, 1
        %s322 = smul.addr %s321, 4
        %s323 = scalar_lea.vmem %s6, %s322
        %s325 = sor.u32 255, 127
        %s326 = sand.u32 %s325, 85
        %s327 = sshrl.u32 %s326, 1
        %s328 = sor.u32 %s326, %s327
        %s329 = sand.u32 51, %s328
        %s330 = sshrl.u32 %s329, 2
        %s331 = sor.u32 %s329, %s330
        %s332 = sand.u32 15, %s331
        %v333 = vld [vmem:[%s323] sm:%s332]
        %v334 = vunpack.c.l.bf16 %v333
        %v335 = vunpack.c.h.bf16 %v333
        %s336 = smul.addr %s29, 8
        %v337 = vlaneseq
        %v338 = vshrl.u32 %v337, 7
        %v339 = vstv %s336
        %v340 = vadd.s32 %v338, %v339
        %vm341 = vcmp.lt.s32.totalorder %v340, 12
        %v342 = vsel %vm341, %v334, %v14
        %v343 = vlaneseq
        %v344 = vand.u32 %v343, 127
        %vm346 = vcmp.lt.s32.totalorder %v344, 63
        %v347 = vsel %vm346, %v342, %v14
        %v348 = vpack.c.bf16 0.0, %v347
        %350 = vst [vmem:[#allocation14] sm:$0xf] %v348
        %v352 = vld [vmem:[#allocation14] sm:$0xf]
        %v353 = vld [vmem:[#allocation7] sm:$0xff]
        %v354 = vld [vmem:[#allocation7 + $0x8] sm:$0xff]
        %v355 = vld [vmem:[#allocation7 + $0x10] sm:$0xff]
        %v356 = vld [vmem:[#allocation7 + $0x18] sm:$0xff]
        %v357 = vld [vmem:[#allocation7 + $0x20] sm:$0xff]
        %v358 = vld [vmem:[#allocation7 + $0x28] sm:$0xff]
        %v359 = vld [vmem:[#allocation7 + $0x30] sm:$0xff]
        %v360 = vld [vmem:[#allocation7 + $0x38] sm:$0xff]
        %v361 = vld [vmem:[%s1] sm:$0x3]
        %v363 = vlaneseq
        %v364 = vshrl.u32 %v363, 7
        %v365 = vsub.s32 0, %v364
        %v366 = vrot.slane %v361, %v365
        %v367 = vlaneseq
        %v368 = vshrl.u32 %v367, 7
        %v369 = vsub.s32 1, %v368
        %v370 = vrot.slane %v361, %v369
        %v381 = vunpack.c.l.b16 %v353
        %v382 = vunpack.c.h.b16 %v353
        %v383 = vunpack.c.l.b16 %v354
        %v384 = vunpack.c.h.b16 %v354
        %v385 = vunpack.c.l.b16 %v355
        %v386 = vunpack.c.h.b16 %v355
        %v387 = vunpack.c.l.b16 %v356
        %v388 = vunpack.c.h.b16 %v356
        %v389 = vunpack.c.l.b16 %v357
        %v390 = vunpack.c.h.b16 %v357
        %v391 = vunpack.c.l.b16 %v358
        %v392 = vunpack.c.h.b16 %v358
        %v393 = vunpack.c.l.b16 %v359
        %v394 = vunpack.c.h.b16 %v359
        %v395 = vunpack.c.l.b16 %v360
        %v396 = vunpack.c.h.b16 %v360
        %v397 = vpack.c.b16 %v383, %v381
        %v398 = vpack.c.b16 %v384, %v382
        %v399 = vpack.c.b16 %v387, %v385
        %v400 = vpack.c.b16 %v388, %v386
        %v401 = vpack.c.b16 %v391, %v389
        %v402 = vpack.c.b16 %v392, %v390
        %v403 = vpack.c.b16 %v395, %v393
        %v404 = vpack.c.b16 %v396, %v394
        %vm413 = vcmask 523264
        %v415 = vsel %vm413, %v352, 0
        %417 = vmatprep.subr.bf16.mxu0 %v398
        %418 = vmatpush1.bf16.msra.mxu0 %v397
        %419 = vmatprep.subr.bf16.mxu0 %v400
        %420 = vmatpush1.bf16.msra.mxu0 %v399
        %421 = vmatprep.subr.bf16.mxu0 %v402
        %422 = vmatpush1.bf16.msra.mxu0 %v401
        %423 = vmatprep.subr.bf16.mxu0 %v404
        %424 = vmatpush1.bf16.msra.mxu0 %v403
        %425 = vmatprep.subr.bf16.mxu0 0
        %426 = vmatpush1.bf16.msra.mxu0 0
        %427 = vmatprep.subr.bf16.mxu0 0
        %428 = vmatpush1.bf16.msra.mxu0 0
        %429 = vmatprep.subr.bf16.mxu0 0
        %430 = vmatpush1.bf16.msra.mxu0 0
        %431 = vmatprep.subr.bf16.mxu0 0
        %432 = vmatpush1.bf16.msra.mxu0 0
        %433 = vmatprep.subr.bf16.mxu0 0
        %434 = vmatpush1.bf16.msra.mxu0 0
        %435 = vmatprep.subr.bf16.mxu0 0
        %436 = vmatpush1.bf16.msra.mxu0 0
        %437 = vmatprep.subr.bf16.mxu0 0
        %438 = vmatpush1.bf16.msra.mxu0 0
        %439 = vmatprep.subr.bf16.mxu0 0
        %440 = vmatpush1.bf16.msra.mxu0 0
        %441 = vmatprep.subr.bf16.mxu0 0
        %442 = vmatpush1.bf16.msra.mxu0 0
        %443 = vmatprep.subr.bf16.mxu0 0
        %444 = vmatpush1.bf16.msra.mxu0 0
        %445 = vmatprep.subr.bf16.mxu0 0
        %446 = vmatpush1.bf16.msra.mxu0 0
        %447 = vmatprep.subr.bf16.mxu0 0
        %448 = vmatpush1.bf16.msra.mxu0 0
        %449 = vmatprep.mubr.bf16.mxu0 0
        %450 = vmatmul.mubr.bf16.gmra.mrb[0].mxu0 %v415
        %v451 = vpop.f32.mrb[0].mxu0
        %v452 = vadd.f32 %v366, %v451
        %v453 = vpop.f32.mrb[0].mxu0
        %v454 = vadd.f32 %v370, %v453
        %v455 = vpop.f32.mrb[0].mxu0
        %v456 = vpop.f32.mrb[0].mxu0
        %457 = vdwg.mxu0
        %v458 = vmax.f32 %v452, 0.0
        %v459 = vmax.f32 %v454, 0.0
        %v460 = vpack.c.bf16 %v458, %v458
        %v461 = vpack.c.bf16 %v459, %v459
        %v462 = vld [vmem:[#allocation10] sm:$0xf]
        %v463 = vld [vmem:[#allocation10 + $0x4] sm:$0xf]
        %v464 = vld [vmem:[#allocation10 + $0x8] sm:$0xf]
        %v465 = vld [vmem:[#allocation10 + $0xc] sm:$0xf]
        %v466 = vld [vmem:[#allocation10 + $0x10] sm:$0xf]
        %v467 = vld [vmem:[#allocation10 + $0x14] sm:$0xf]
        %v468 = vld [vmem:[#allocation10 + $0x18] sm:$0xf]
        %v469 = vld [vmem:[#allocation10 + $0x1c] sm:$0xf]
        %v470 = vld [vmem:[#allocation10 + $0x20] sm:$0xf]
        %v471 = vld [vmem:[#allocation10 + $0x24] sm:$0xf]
        %v472 = vld [vmem:[#allocation10 + $0x28] sm:$0xf]
        %v473 = vld [vmem:[#allocation10 + $0x2c] sm:$0xf]
        %v474 = vld [vmem:[#allocation10 + $0x30] sm:$0xf]
        %v475 = vld [vmem:[#allocation10 + $0x34] sm:$0xf]
        %v476 = vld [vmem:[#allocation10 + $0x38] sm:$0xf]
        %v477 = vld [vmem:[#allocation10 + $0x3c] sm:$0xf]
        %v478 = vld [vmem:[#allocation10 + $0x40] sm:$0xf]
        %v479 = vld [vmem:[#allocation10 + $0x44] sm:$0xf]
        %v480 = vld [vmem:[#allocation10 + $0x48] sm:$0xf]
        %v481 = vld [vmem:[#allocation10 + $0x4c] sm:$0xf]
        %v482 = vld [vmem:[#allocation10 + $0x50] sm:$0xf]
        %v483 = vld [vmem:[#allocation10 + $0x54] sm:$0xf]
        %v484 = vld [vmem:[#allocation10 + $0x58] sm:$0xf]
        %v485 = vld [vmem:[#allocation10 + $0x5c] sm:$0xf]
        %v486 = vld [vmem:[#allocation10 + $0x60] sm:$0xf]
        %v487 = vld [vmem:[#allocation10 + $0x64] sm:$0xf]
        %v488 = vld [vmem:[#allocation10 + $0x68] sm:$0xf]
        %v489 = vld [vmem:[#allocation10 + $0x6c] sm:$0xf]
        %v490 = vld [vmem:[#allocation10 + $0x70] sm:$0xf]
        %v491 = vld [vmem:[#allocation10 + $0x74] sm:$0xf]
        %v492 = vld [vmem:[#allocation10 + $0x78] sm:$0xf]
        %v493 = vld [vmem:[#allocation10 + $0x7c] sm:$0xf]
        %v494 = vld [vmem:[%s3] sm:$0x1]
        %v496 = vlaneseq
        %v497 = vshrl.u32 %v496, 7
        %v498 = vsub.s32 0, %v497
        %v499 = vrot.slane %v494, %v498
        %v533 = vunpack.c.l.b16 %v462
        %v534 = vunpack.c.l.b16 %v463
        %v535 = vunpack.c.l.b16 %v464
        %v536 = vunpack.c.l.b16 %v465
        %v537 = vunpack.c.l.b16 %v466
        %v538 = vunpack.c.l.b16 %v467
        %v539 = vunpack.c.l.b16 %v468
        %v540 = vunpack.c.l.b16 %v469
        %v541 = vunpack.c.l.b16 %v470
        %v542 = vunpack.c.l.b16 %v471
        %v543 = vunpack.c.l.b16 %v472
        %v544 = vunpack.c.l.b16 %v473
        %v545 = vunpack.c.l.b16 %v474
        %v546 = vunpack.c.l.b16 %v475
        %v547 = vunpack.c.l.b16 %v476
        %v548 = vunpack.c.l.b16 %v477
        %v549 = vunpack.c.l.b16 %v478
        %v550 = vunpack.c.l.b16 %v479
        %v551 = vunpack.c.l.b16 %v480
        %v552 = vunpack.c.l.b16 %v481
        %v553 = vunpack.c.l.b16 %v482
        %v554 = vunpack.c.l.b16 %v483
        %v555 = vunpack.c.l.b16 %v484
        %v556 = vunpack.c.l.b16 %v485
        %v557 = vunpack.c.l.b16 %v486
        %v558 = vunpack.c.l.b16 %v487
        %v559 = vunpack.c.l.b16 %v488
        %v560 = vunpack.c.l.b16 %v489
        %v561 = vunpack.c.l.b16 %v490
        %v562 = vunpack.c.l.b16 %v491
        %v563 = vunpack.c.l.b16 %v492
        %v564 = vunpack.c.l.b16 %v493
        %v565 = vpack.c.b16 %v534, %v533
        %v566 = vpack.c.b16 %v536, %v535
        %v567 = vpack.c.b16 %v538, %v537
        %v568 = vpack.c.b16 %v540, %v539
        %v569 = vpack.c.b16 %v542, %v541
        %v570 = vpack.c.b16 %v544, %v543
        %v571 = vpack.c.b16 %v546, %v545
        %v572 = vpack.c.b16 %v548, %v547
        %v573 = vpack.c.b16 %v550, %v549
        %v574 = vpack.c.b16 %v552, %v551
        %v575 = vpack.c.b16 %v554, %v553
        %v576 = vpack.c.b16 %v556, %v555
        %v577 = vpack.c.b16 %v558, %v557
        %v578 = vpack.c.b16 %v560, %v559
        %v579 = vpack.c.b16 %v562, %v561
        %v580 = vpack.c.b16 %v564, %v563
        %597 = vmatprep.subr.bf16.mxu0 0
        %598 = vmatpush1.bf16.msra.mxu0 %v565
        %599 = vmatprep.subr.bf16.mxu0 0
        %600 = vmatpush1.bf16.msra.mxu0 %v566
        %601 = vmatprep.subr.bf16.mxu0 0
        %602 = vmatpush1.bf16.msra.mxu0 %v567
        %603 = vmatprep.subr.bf16.mxu0 0
        %604 = vmatpush1.bf16.msra.mxu0 %v568
        %605 = vmatprep.subr.bf16.mxu0 0
        %606 = vmatpush1.bf16.msra.mxu0 %v569
        %607 = vmatprep.subr.bf16.mxu0 0
        %608 = vmatpush1.bf16.msra.mxu0 %v570
        %609 = vmatprep.subr.bf16.mxu0 0
        %610 = vmatpush1.bf16.msra.mxu0 %v571
        %611 = vmatprep.subr.bf16.mxu0 0
        %612 = vmatpush1.bf16.msra.mxu0 %v572
        %613 = vmatprep.subr.bf16.mxu0 0
        %614 = vmatpush1.bf16.msra.mxu0 %v573
        %615 = vmatprep.subr.bf16.mxu0 0
        %616 = vmatpush1.bf16.msra.mxu0 %v574
        %617 = vmatprep.subr.bf16.mxu0 0
        %618 = vmatpush1.bf16.msra.mxu0 %v575
        %619 = vmatprep.subr.bf16.mxu0 0
        %620 = vmatpush1.bf16.msra.mxu0 %v576
        %621 = vmatprep.subr.bf16.mxu0 0
        %622 = vmatpush1.bf16.msra.mxu0 %v577
        %623 = vmatprep.subr.bf16.mxu0 0
        %624 = vmatpush1.bf16.msra.mxu0 %v578
        %625 = vmatprep.subr.bf16.mxu0 0
        %626 = vmatpush1.bf16.msra.mxu0 %v579
        %627 = vmatprep.subr.bf16.mxu0 0
        %628 = vmatpush1.bf16.msra.mxu0 %v580
        %629 = vmatprep.mubr.bf16.mxu0 %v461
        %630 = vmatmul.mubr.bf16.gmra.mrb[0].mxu0 %v460
        %v631 = vpop.f32.mrb[0].mxu0
        %v632 = vadd.f32 %v499, %v631
        %v633 = vpop.f32.mrb[0].mxu0
        %v634 = vpop.f32.mrb[0].mxu0
        %v635 = vpop.f32.mrb[0].mxu0
        %636 = vdwg.mxu0
        %v637 = vmax.f32 %v632, 0.0
        %v638 = vpack.c.bf16 %v637, %v637
        %v639 = vld [vmem:[#allocation12] sm:$0xf]
        %v640 = vld [vmem:[#allocation12 + $0x4] sm:$0xf]
        %v641 = vld [vmem:[#allocation12 + $0x8] sm:$0xf]
        %v642 = vld [vmem:[#allocation12 + $0xc] sm:$0xf]
        %v643 = vld [vmem:[#allocation12 + $0x10] sm:$0xf]
        %v644 = vld [vmem:[#allocation12 + $0x14] sm:$0xf]
        %v645 = vld [vmem:[#allocation12 + $0x18] sm:$0xf]
        %v646 = vld [vmem:[#allocation12 + $0x1c] sm:$0xf]
        %v647 = vld [vmem:[#allocation12 + $0x20] sm:$0xf]
        %v648 = vld [vmem:[#allocation12 + $0x24] sm:$0xf]
        %v649 = vld [vmem:[#allocation12 + $0x28] sm:$0xf]
        %v650 = vld [vmem:[#allocation12 + $0x2c] sm:$0xf]
        %v651 = vld [vmem:[#allocation12 + $0x30] sm:$0xf]
        %v652 = vld [vmem:[#allocation12 + $0x34] sm:$0xf]
        %v653 = vld [vmem:[#allocation12 + $0x38] sm:$0xf]
        %v654 = vld [vmem:[#allocation12 + $0x3c] sm:$0xf]
        %v655 = vld [vmem:[%s5] sm:$0x1]
        %v657 = vlaneseq
        %v658 = vshrl.u32 %v657, 7
        %v659 = vsub.s32 0, %v658
        %v660 = vrot.slane %v655, %v659
        %v678 = vunpack.c.l.b16 %v639
        %v679 = vunpack.c.l.b16 %v640
        %v680 = vunpack.c.l.b16 %v641
        %v681 = vunpack.c.l.b16 %v642
        %v682 = vunpack.c.l.b16 %v643
        %v683 = vunpack.c.l.b16 %v644
        %v684 = vunpack.c.l.b16 %v645
        %v685 = vunpack.c.l.b16 %v646
        %v686 = vunpack.c.l.b16 %v647
        %v687 = vunpack.c.l.b16 %v648
        %v688 = vunpack.c.l.b16 %v649
        %v689 = vunpack.c.l.b16 %v650
        %v690 = vunpack.c.l.b16 %v651
        %v691 = vunpack.c.l.b16 %v652
        %v692 = vunpack.c.l.b16 %v653
        %v693 = vunpack.c.l.b16 %v654
        %v694 = vpack.c.b16 %v679, %v678
        %v695 = vpack.c.b16 %v681, %v680
        %v696 = vpack.c.b16 %v683, %v682
        %v697 = vpack.c.b16 %v685, %v684
        %v698 = vpack.c.b16 %v687, %v686
        %v699 = vpack.c.b16 %v689, %v688
        %v700 = vpack.c.b16 %v691, %v690
        %v701 = vpack.c.b16 %v693, %v692
        %710 = vmatprep.subr.bf16.mxu0 0
        %711 = vmatpush1.bf16.msra.mxu0 %v694
        %712 = vmatprep.subr.bf16.mxu0 0
        %713 = vmatpush1.bf16.msra.mxu0 %v695
        %714 = vmatprep.subr.bf16.mxu0 0
        %715 = vmatpush1.bf16.msra.mxu0 %v696
        %716 = vmatprep.subr.bf16.mxu0 0
        %717 = vmatpush1.bf16.msra.mxu0 %v697
        %718 = vmatprep.subr.bf16.mxu0 0
        %719 = vmatpush1.bf16.msra.mxu0 %v698
        %720 = vmatprep.subr.bf16.mxu0 0
        %721 = vmatpush1.bf16.msra.mxu0 %v699
        %722 = vmatprep.subr.bf16.mxu0 0
        %723 = vmatpush1.bf16.msra.mxu0 %v700
        %724 = vmatprep.subr.bf16.mxu0 0
        %725 = vmatpush1.bf16.msra.mxu0 %v701
        %726 = vmatprep.subr.bf16.mxu0 0
        %727 = vmatpush1.bf16.msra.mxu0 0
        %728 = vmatprep.subr.bf16.mxu0 0
        %729 = vmatpush1.bf16.msra.mxu0 0
        %730 = vmatprep.subr.bf16.mxu0 0
        %731 = vmatpush1.bf16.msra.mxu0 0
        %732 = vmatprep.subr.bf16.mxu0 0
        %733 = vmatpush1.bf16.msra.mxu0 0
        %734 = vmatprep.subr.bf16.mxu0 0
        %735 = vmatpush1.bf16.msra.mxu0 0
        %736 = vmatprep.subr.bf16.mxu0 0
        %737 = vmatpush1.bf16.msra.mxu0 0
        %738 = vmatprep.subr.bf16.mxu0 0
        %739 = vmatpush1.bf16.msra.mxu0 0
        %740 = vmatprep.subr.bf16.mxu0 0
        %741 = vmatpush1.bf16.msra.mxu0 0
        %742 = vmatprep.mubr.bf16.mxu0 0
        %743 = vmatmul.mubr.bf16.gmra.mrb[0].mxu0 %v638
        %v744 = vpop.f32.mrb[0].mxu0
        %v745 = vadd.f32 %v660, %v744
        %v746 = vpop.f32.mrb[0].mxu0
        %v747 = vpop.f32.mrb[0].mxu0
        %v748 = vpop.f32.mrb[0].mxu0
        %749 = vdwg.mxu0
        %v750 = vpack.c.bf16 %v745, %v745
        %751 = vst [vmem:[%s319] sm:$0xf] %v750
        %s752 = sand.u32 %s189, 1
        %s753 = scalar_lea.sflag [#allocation9], %s752
        %s754 = sand.u32 %s189, 1
        %s755 = smul.addr %s754, 4
        %s756 = scalar_lea.vmem [#allocation13], %s755
        // Predicated region
        $region61: #{asl_landmark_forward.2} parent=47 // pred_check
          %p757 = pneg %p199
        $region62: #{asl_landmark_forward.2} parent=47 // pred_check_branch
          %759 = sbr.rel (%p757) target = $region64
        $region63: #{asl_landmark_forward.2} parent=47 // pred_region
          %s761 = ssub.s32 64, 64
          %762 = vsyncadd %s753, %s761
          %s763 = smul.addr %s29, 64
          %s764 = scalar_lea.hbm %s8, %s763
          %s766 = sshll.u32 %s756, 4
          %s767 = int_to_ptr.vmem [resolvable:$true] %s766
          %769 = dma.vmem_to_hbm [thread:$0]  %s767, 64, %s764, %s753
        $region64: #{asl_landmark_forward.2} parent=47 // pred_fallthru
          _
      $region48: #{asl_landmark_forward.2} parent=5 // pred_fallthru
        _
      %p770 = scmp.le.s32.totalorder 2, %s24
      // Predicated region
      $region65: #{asl_landmark_forward.2} parent=5 // pred_check
        %p771 = pneg %p770
      $region66: #{asl_landmark_forward.2} parent=5 // pred_check_branch
        %773 = sbr.rel (%p771) target = $region68
      $region67: #{asl_landmark_forward.2} parent=5 // pred_region
        %s774 = ssub.s32 %s24, 2
        // Predicated region
        $region69: #{asl_landmark_forward.2} parent=67 // pred_check
          %p775 = pneg %p205
        $region70: #{asl_landmark_forward.2} parent=67 // pred_check_branch
          %777 = sbr.rel (%p775) target = $region72
        $region71: #{asl_landmark_forward.2} parent=67 // pred_region
          %s778 = sand.u32 %s190, 1
          %s779 = scalar_lea.sflag [#allocation9], %s778
          %s780 = sand.u32 %s190, 1
          %s781 = smul.addr %s780, 4
          %s782 = scalar_lea.vmem [#allocation13], %s781
          %783 = dma.done %s779, 64
        $region72: #{asl_landmark_forward.2} parent=67 // pred_fallthru
          _
      $region68: #{asl_landmark_forward.2} parent=5 // pred_fallthru
        _
    $region6: #{asl_landmark_forward.2} parent=1 // loop_footer
      %s28 = sadd.s32 1, %s24
    $region7: #{asl_landmark_forward.2} parent=1 // loop_footer_branch
      %23 = sbr.rel target = $region3
    $region8: #{asl_landmark_forward.2} parent=1 // loop_exit
      _
    %784 = vsyncpa [#allocation8], 1
    %s785 = scalar_lea.sflag [#allocation8], 1
    %786 = vsyncpa %s785, 1
    %787 = vsyncpa [#allocation11], 1
    %788 = vsyncpa [#allocation9], 1
    %s789 = scalar_lea.sflag [#allocation9], 1
    %790 = vsyncpa %s789, 1

</llo_original>
